<compile_context>
chip_gen: v7x
topology: tpu7x:2x2x1
jax: 0.10.0
libtpu: 0.0.40
codegen_flags: <defaults>
</compile_context>

<pallas_src>
import math

import jax
import jax.numpy as jnp
from jax.experimental import pallas as pl
from jax.experimental.pallas import tpu as pltpu


def _round_up(x, m):
    return ((x + m - 1) // m) * m


def _make_gwl_kernel(H, TH, mask_last_h):
    def kernel(x_ref, w_ref, b_ref, o_ref, acc_ref):
        # x_ref: (TB, TC, TH)  w_ref: (1, TC, TH)  b_ref: (1, TC)
        # o_ref: (TB, TC)      acc_ref: (TB, TC) f32 scratch
        h = pl.program_id(2)

        @pl.when(h == 0)
        def _init():
            acc_ref[...] = jnp.zeros_like(acc_ref)

        # Multiply in the input dtype (bf16 VALU on v6e/v7x); accumulate in f32.
        prod = (w_ref[...] * x_ref[...]).astype(jnp.float32)     # (TB, TC, TH)
        if mask_last_h:
            # Ragged last H chunk: zero out lanes beyond the true hidden_dim
            # (their contents are unspecified OOB reads).
            rem = H - h * TH
            lane = jax.lax.broadcasted_iota(jnp.int32, prod.shape, 2)
            prod = jnp.where(lane < rem, prod, 0.0)
        acc_ref[...] += jnp.sum(prod, axis=-1)                   # f32 accumulation

        @pl.when(h == pl.num_programs(2) - 1)
        def _finalize():
            o_ref[...] = (
                acc_ref[...] + b_ref[...].astype(jnp.float32)
            ).astype(o_ref.dtype)

    return kernel


def groupwise_linear(x, W, b, *,
                     vmem_budget_bytes=28 << 20,   # buffer budget (safe on v7x);
                     vmem_limit_bytes=48 << 20):   # raise both on v5e/v6e (128 MiB VMEM)
    B, C, H = x.shape
    assert W.shape == (1, C, H) and b.shape == (1, C)
    dtype = x.dtype
    bpe = jnp.dtype(dtype).itemsize
    sub = {4: 8, 2: 16, 1: 32}.get(bpe, 8)   # sublane padding of 2nd-to-last dim

    # Padding-aware VMEM footprint of one buffer set (inputs/outputs are
    # double-buffered by the Pallas pipeline; scratch accumulator is single).
    def tile_bytes(tb, tc, th):
        tc_sub = _round_up(tc, sub)
        th_lane = _round_up(th, 128)
        tc_lane = _round_up(tc, 128)
        x_b = tb * tc_sub * th_lane * bpe
        w_b = tc_sub * th_lane * bpe
        b_b = 8 * tc_lane * bpe
        o_b = _round_up(tb, 8) * tc_lane * bpe
        acc_b = _round_up(tb, 8) * tc_lane * 4
        return 2 * (x_b + w_b + b_b) + 2 * o_b + acc_b

    # ---- tile selection --------------------------------------------------
    # TC: either the full class dim (legal as "equal to array dim") or a
    # multiple of 128 (lane-dense output stores, legal partial edge block).
    TC = C if C <= 512 else 512
    # TH: prefer the whole reduction in one step; otherwise multiples of 128.
    TH = H
    TB_min = B if B < 8 else 8
    while tile_bytes(TB_min, TC, TH) > vmem_budget_bytes:
        if TH > 128:
            TH = max(128, _round_up(TH // 2, 128))
        elif TC >= 256 and TC % 128 == 0:
            TC //= 2
        else:
            break  # minimal tiles; far below the budget for any sane shape

    # TB: largest legal tile (multiple of 8, or == B) within the budget.
    TB = TB_min
    cands = sorted({B} | {m for m in (8, 16, 32, 64, 128, 256, 512, 1024) if m < B})
    for cand in cands:
        if cand != B and cand % 8 != 0:
            continue
        if cand >= TB and tile_bytes(cand, TC, TH) <= vmem_budget_bytes:
            TB = cand

    n_b = pl.cdiv(B, TB)
    n_c = pl.cdiv(C, TC)
    n_h = pl.cdiv(H, TH)
    mask_last_h = (n_h > 1) and (H % TH != 0)

    # ---- grid ordering -----------------------------------------------------
    # C outer keeps the W tile resident across the inner B sweep.  If C fits in
    # a single tile, put B outermost so the megacore split (v7x, 2 TCs) lands on
    # an axis that actually has >= 2 tiles; W residency is unaffected (1 C tile).
    b_outer = (n_c == 1)
    if b_outer:
        grid = (n_b, n_c, n_h)
        x_map = lambda i0, i1, h: (i0, i1, h)
        w_map = lambda i0, i1, h: (0, i1, h)
        b_map = lambda i0, i1, h: (0, i1)
        o_map = lambda i0, i1, h: (i0, i1)
    else:
        grid = (n_c, n_b, n_h)
        x_map = lambda i0, i1, h: (i1, i0, h)
        w_map = lambda i0, i1, h: (0, i0, h)
        b_map = lambda i0, i1, h: (0, i0)
        o_map = lambda i0, i1, h: (i1, i0)

    kernel = _make_gwl_kernel(H, TH, mask_last_h)

    cost = pl.CostEstimate(
        flops=2 * B * C * H,
        transcendentals=0,
        bytes_accessed=(B * C * H + C * H + C + B * C) * bpe,
    )

    return pl.pallas_call(
        kernel,
        out_shape=jax.ShapeDtypeStruct((B, C), dtype),
        grid_spec=pltpu.PrefetchScalarGridSpec(
            num_scalar_prefetch=0,
            grid=grid,
            in_specs=[
                pl.BlockSpec((TB, TC, TH), x_map),
                pl.BlockSpec((1, TC, TH), w_map),   # resident across the inner axis
                pl.BlockSpec((1, TC), b_map),
            ],
            out_specs=pl.BlockSpec((TB, TC), o_map),
            scratch_shapes=[pltpu.VMEM((TB, TC), jnp.float32)],
        ),
        compiler_params=pltpu.CompilerParams(
            dimension_semantics=("parallel", "parallel", "arbitrary"),
            vmem_limit_bytes=vmem_limit_bytes,
        ),
        cost_estimate=cost,
    )(x, W, b)


if __name__ == "__main__":
    # Small shapes consistent with the module's forward.
    B, num_class, hidden_dim = 2, 8, 32

    key = jax.random.PRNGKey(0)
    kx, kw, kb = jax.random.split(key, 3)

    # Deterministic parameter init mirroring reset_parameters():
    # uniform(-stdv, stdv) with stdv = 1/sqrt(hidden_dim).
    stdv = 1.0 / math.sqrt(hidden_dim)
    W = jax.random.uniform(
        kw, (1, num_class, hidden_dim), dtype=jnp.float32,
        minval=-stdv, maxval=stdv)
    b = jax.random.uniform(
        kb, (1, num_class), dtype=jnp.float32, minval=-stdv, maxval=stdv)

    x = jax.random.normal(kx, (B, num_class, hidden_dim), dtype=jnp.float32)

    out = groupwise_linear(x, W, b)
    out = jax.block_until_ready(out)

    # Pure-JAX reference check of the forward pass.
    ref = jnp.sum(W * x, axis=-1) + b
    assert out.shape == (B, num_class)
    assert jnp.allclose(out, ref, atol=1e-5, rtol=1e-5)

    print("KERNEL_OK")
</pallas_src>

<mosaic_0001>
module attributes {stable_mosaic.version = 11 : i64} {
  func.func @kernel(%arg0: i32, %arg1: i32, %arg2: i32, %arg3: memref<2x8x32xf32, #tpu.memory_space<vmem>>, %arg4: memref<1x8x32xf32, #tpu.memory_space<vmem>>, %arg5: memref<1x8xf32, #tpu.memory_space<vmem>>, %arg6: memref<2x8xf32, #tpu.memory_space<vmem>>, %arg7: memref<2x8xf32, #tpu.memory_space<vmem>>) attributes {dimension_semantics = [#tpu.dimension_semantics<parallel>, #tpu.dimension_semantics<parallel>, #tpu.dimension_semantics<arbitrary>], iteration_bounds = array<i64: 1, 1, 1>, scalar_prefetch = 0 : i64, scratch_operands = 1 : i64, tpu.core_type = #tpu.core_type<tc>, window_params = [{transform_indices = @transform_0, window_bounds = array<i64: 2, 8, 32>}, {transform_indices = @transform_1, window_bounds = array<i64: 1, 8, 32>}, {transform_indices = @transform_2, window_bounds = array<i64: 1, 8>}, {transform_indices = @transform_3, window_bounds = array<i64: 2, 8>}]} {
    %c0_i32 = arith.constant 0 : i32
    %0 = arith.cmpi eq, %arg2, %c0_i32 : i32
    %1 = arith.extui %0 : i1 to i32
    %c0_i32_0 = arith.constant 0 : i32
    %2 = arith.cmpi ne, %1, %c0_i32_0 : i32
    scf.if %2 {
      %cst_12 = arith.constant 0.000000e+00 : f32
      %14 = vector.broadcast %cst_12 : f32 to vector<2x8xf32>
      %c0_13 = arith.constant 0 : index
      %c0_14 = arith.constant 0 : index
      %15 = vector.load %arg7[%c0_13, %c0_14] : memref<2x8xf32, #tpu.memory_space<vmem>>, vector<2x8xf32>
      tpu.vector_store %arg7[%c0_13, %c0_14], %14 {strides = array<i32>} : memref<2x8xf32, #tpu.memory_space<vmem>>, vector<2x8xf32>,
    } else {
    }
    %c0 = arith.constant 0 : index
    %c0_1 = arith.constant 0 : index
    %c0_2 = arith.constant 0 : index
    %3 = vector.load %arg4[%c0, %c0_1, %c0_2] : memref<1x8x32xf32, #tpu.memory_space<vmem>>, vector<1x8x32xf32>
    %c0_3 = arith.constant 0 : index
    %c0_4 = arith.constant 0 : index
    %c0_5 = arith.constant 0 : index
    %4 = vector.load %arg3[%c0_3, %c0_4, %c0_5] : memref<2x8x32xf32, #tpu.memory_space<vmem>>, vector<2x8x32xf32>
    %5 = vector.broadcast %3 : vector<1x8x32xf32> to vector<2x8x32xf32>
    %6 = arith.mulf %5, %4 : vector<2x8x32xf32>
    %c0_6 = arith.constant 0 : index
    %c0_7 = arith.constant 0 : index
    %7 = vector.load %arg7[%c0_6, %c0_7] : memref<2x8xf32, #tpu.memory_space<vmem>>, vector<2x8xf32>
    %cst = arith.constant dense<0.000000e+00> : vector<2x8xf32>
    %8 = vector.multi_reduction <add>, %6, %cst [2] : vector<2x8x32xf32> to vector<2x8xf32>
    %9 = arith.addf %7, %8 : vector<2x8xf32>
    %c0_8 = arith.constant 0 : index
    %c0_9 = arith.constant 0 : index
    %10 = vector.load %arg7[%c0_8, %c0_9] : memref<2x8xf32, #tpu.memory_space<vmem>>, vector<2x8xf32>
    tpu.vector_store %arg7[%c0_8, %c0_9], %9 {strides = array<i32>} : memref<2x8xf32, #tpu.memory_space<vmem>>, vector<2x8xf32>,
    %c0_i32_10 = arith.constant 0 : i32
    %11 = arith.cmpi eq, %arg2, %c0_i32_10 : i32
    %12 = arith.extui %11 : i1 to i32
    %c0_i32_11 = arith.constant 0 : i32
    %13 = arith.cmpi ne, %12, %c0_i32_11 : i32
    scf.if %13 {
      %c0_12 = arith.constant 0 : index
      %c0_13 = arith.constant 0 : index
      %14 = vector.load %arg7[%c0_12, %c0_13] : memref<2x8xf32, #tpu.memory_space<vmem>>, vector<2x8xf32>
      %c0_14 = arith.constant 0 : index
      %c0_15 = arith.constant 0 : index
      %15 = vector.load %arg5[%c0_14, %c0_15] : memref<1x8xf32, #tpu.memory_space<vmem>>, vector<1x8xf32>
      %16 = vector.broadcast %15 : vector<1x8xf32> to vector<2x8xf32>
      %17 = arith.addf %14, %16 : vector<2x8xf32>
      %c0_16 = arith.constant 0 : index
      %c0_17 = arith.constant 0 : index
      %18 = vector.load %arg6[%c0_16, %c0_17] : memref<2x8xf32, #tpu.memory_space<vmem>>, vector<2x8xf32>
      tpu.vector_store %arg6[%c0_16, %c0_17], %17 {strides = array<i32>} : memref<2x8xf32, #tpu.memory_space<vmem>>, vector<2x8xf32>,
    } else {
    }
    return
  }
  func.func @transform_0(%arg0: i32, %arg1: i32, %arg2: i32) -> (i32, i32, i32) {
    %c0_i32 = arith.constant 0 : i32
    return %arg0, %arg1, %arg2 : i32, i32, i32
  }
  func.func @transform_1(%arg0: i32, %arg1: i32, %arg2: i32) -> (i32, i32, i32) {
    %c0_i32 = arith.constant 0 : i32
    %c0_i32_0 = arith.constant 0 : i32
    return %c0_i32, %arg1, %arg2 : i32, i32, i32
  }
  func.func @transform_2(%arg0: i32, %arg1: i32, %arg2: i32) -> (i32, i32) {
    %c0_i32 = arith.constant 0 : i32
    %c0_i32_0 = arith.constant 0 : i32
    return %c0_i32, %arg1 : i32, i32
  }
  func.func @transform_3(%arg0: i32, %arg1: i32, %arg2: i32) -> (i32, i32) {
    %c0_i32 = arith.constant 0 : i32
    return %arg0, %arg1 : i32, i32
  }
}

</mosaic_0001>

<llo_original>
// kernel: tpu_custom_call.1
$region0: #{tpu_custom_call.1}
  #allocation0 [shape = 'u32[]', space=smem, size = 0x4, offset = 0x4, fixed_abs, tag = 'smem constant byte address 0x4 - core index']
  #allocation1 [shape = 'u32[144,128]{1,0:T(1,128)}', space=vmem, size = 0x12000, scoped, tag = 'internal scratch']
  #allocation2 [shape = 'f32[2,8]{1,0:T(2,128)}', space=vmem, size = 0x400, scoped, tag = 'scratch operand']
  %s0 = inlined_call_operand.hbm [shape: f32[2,8,32], index: 0, kind: input, shape index: {}]
  %s1 = inlined_call_operand.hbm [shape: f32[1,8,32], index: 1, kind: input, shape index: {}]
  %s2 = inlined_call_operand.vmem [shape: f32[1,8], index: 2, kind: input, shape index: {}]
  %s3 = inlined_call_operand.hbm [shape: f32[2,8], index: 3, kind: output, shape index: {}]
  %s4 = sld [smem:[#allocation0]]
  $region38: #{tpu_custom_call.1} parent=0
    _
  %s6 = ssub.s32 1, %s4
  %s7 = scalar_select 0, %s6, %s4
  $region1: #{tpu_custom_call.1} parent=0
    #allocation3 [shape = 'u8[8192]{0}', space=vmem, size = 0x2000, scoped, tag = 'input window, operand 0, single buffered']
    #allocation4 [shape = 's32[1]{0}', space=sflag, size = 0x4, scoped, tag = 'scoped memory for tpu_custom_call.1']
    #allocation5 [shape = 's32[1]{0}', space=sflag, size = 0x4, scoped, tag = 'scoped memory for tpu_custom_call.1']
    #allocation6 [shape = 'u8[4096]{0}', space=vmem, size = 0x1000, scoped, tag = 'input window, operand 1, single buffered']
    #allocation7 [shape = 's32[1]{0}', space=sflag, size = 0x4, scoped, tag = 'scoped memory for tpu_custom_call.1']
    #allocation8 [shape = 'u8[1024]{0}', space=vmem, size = 0x400, scoped, tag = 'output window, operand 0, single buffered']
    %8 = vsyncpa [#allocation4], 0
    %9 = vsyncpa [#allocation7], 0
    %10 = vsyncpa [#allocation5], 0
    // Predicated region
    $region2: #{tpu_custom_call.1} parent=1 // pred_check
      _
    $region3: #{tpu_custom_call.1} parent=1 // pred_check_branch
      %12 = sbr.rel (0) target = $region5
    $region4: #{tpu_custom_call.1} parent=1 // pred_region
      %s14 = ssub.s32 256, 256
      %15 = vsyncadd [#allocation4], %s14
      %s16 = sshll.u32 [#allocation3], 4
      %s17 = int_to_ptr.vmem [resolvable:$true] %s16
      %22 = dma.hbm_to_vmem [thread:$0]  %s0, 256, %s17, [#allocation4], 128, 128, 8
    $region5: #{tpu_custom_call.1} parent=1 // pred_fallthru
      _
    // Predicated region
    $region6: #{tpu_custom_call.1} parent=1 // pred_check
      _
    $region7: #{tpu_custom_call.1} parent=1 // pred_check_branch
      %24 = sbr.rel (0) target = $region9
    $region8: #{tpu_custom_call.1} parent=1 // pred_region
      %s26 = ssub.s32 128, 128
      %27 = vsyncadd [#allocation7], %s26
      %s29 = sshll.u32 [#allocation6], 4
      %s30 = int_to_ptr.vmem [resolvable:$true] %s29
      %32 = dma.hbm_to_vmem [thread:$0]  %s1, 128, %s30, [#allocation7]
    $region9: #{tpu_custom_call.1} parent=1 // pred_fallthru
      _
    // Predicated region
    $region10: #{tpu_custom_call.1} parent=1 // pred_check
      _
    $region11: #{tpu_custom_call.1} parent=1 // pred_check_branch
      %34 = sbr.rel (0) target = $region13
    $region12: #{tpu_custom_call.1} parent=1 // pred_region
      _
    $region13: #{tpu_custom_call.1} parent=1 // pred_fallthru
      _
    // Predicated region
    $region14: #{tpu_custom_call.1} parent=1 // pred_check
      _
    $region15: #{tpu_custom_call.1} parent=1 // pred_check_branch
      %36 = sbr.rel (0) target = $region17
    $region16: #{tpu_custom_call.1} parent=1 // pred_region
      %37 = dma.done [#allocation4], 256
    $region17: #{tpu_custom_call.1} parent=1 // pred_fallthru
      _
    // Predicated region
    $region18: #{tpu_custom_call.1} parent=1 // pred_check
      _
    $region19: #{tpu_custom_call.1} parent=1 // pred_check_branch
      %39 = sbr.rel (0) target = $region21
    $region20: #{tpu_custom_call.1} parent=1 // pred_region
      %40 = dma.done [#allocation7], 128
    $region21: #{tpu_custom_call.1} parent=1 // pred_fallthru
      _
    %p41 = scmp.eq.s32.totalorder 0, 0
    // Predicated region
    $region22: #{tpu_custom_call.1} parent=1 // pred_check
      %p42 = pneg %p41
    $region23: #{tpu_custom_call.1} parent=1 // pred_check_branch
      %44 = sbr.rel (%p42) target = $region25
    $region24: #{tpu_custom_call.1} parent=1 // pred_region
      %vm45 = vcmask 58368
      %46 = vst.msk [vmem:[#allocation2] sm:$0x3] %vm45, 0.0
    $region25: #{tpu_custom_call.1} parent=1 // pred_fallthru
      _
    %v47 = vld [vmem:[#allocation6] sm:$0xff]
    %v48 = vld [vmem:[#allocation3] sm:$0xff]
    %v49 = vld [vmem:[#allocation3 + $0x8] sm:$0xff]
    %v50 = vmul.f32 %v47, %v48
    %v51 = vmul.f32 %v47, %v49
    %v52 = vld [vmem:[#allocation2] sm:$0x3]
    %vm53 = vcmask 261120
    %v54 = vsel %vm53, %v50, 0.0
    %55 = vadd.xlane.f32.xlu0 %v54
    %v56 = vpop.xlane.xlu0 %55
    %v57 = vsel %vm53, %v51, 0.0
    %58 = vadd.xlane.f32.xlu0 %v57
    %v59 = vpop.xlane.xlu0 %58
    %v62 = vlaneseq
    %v63 = vand.u32 %v62, 127
    %v64 = vlaneseq
    %v65 = vshrl.u32 %v64, 7
    %v66 = vsub.s32 %v63, %v65
    %v67 = vrot.slane %v56, %v66
    %v68 = vlaneseq
    %v69 = vshrl.u32 %v68, 7
    %v70 = vsub.s32 %v63, %v69
    %v71 = vrot.slane %v59, %v70
    %vm72 = vcmask 1041409
    %v73 = vsel %vm72, %v71, %v67
    %v75 = vadd.f32 %v52, %v73
    %vm76 = vcmask 58368
    %77 = vst.msk [vmem:[#allocation2] sm:$0x3] %vm76, %v75
    // Predicated region
    $region26: #{tpu_custom_call.1} parent=1 // pred_check
      %p78 = pneg %p41
    $region27: #{tpu_custom_call.1} parent=1 // pred_check_branch
      %80 = sbr.rel (%p78) target = $region29
    $region28: #{tpu_custom_call.1} parent=1 // pred_region
      %v81 = vld [vmem:[#allocation2] sm:$0x3]
      %v82 = vld [vmem:[%s2] sm:$0x1]
      %v84 = vlaneseq
      %v85 = vshrl.u32 %v84, 7
      %v86 = vsub.s32 0, %v85
      %v87 = vrot.slane %v82, %v86
      %v89 = vadd.f32 %v81, %v87
      %90 = vst.msk [vmem:[#allocation8] sm:$0x3] %vm76, %v89
    $region29: #{tpu_custom_call.1} parent=1 // pred_fallthru
      _
    // Predicated region
    $region30: #{tpu_custom_call.1} parent=1 // pred_check
      _
    $region31: #{tpu_custom_call.1} parent=1 // pred_check_branch
      %92 = sbr.rel (0) target = $region33
    $region32: #{tpu_custom_call.1} parent=1 // pred_region
      %s94 = ssub.s32 32, 32
      %95 = vsyncadd [#allocation5], %s94
      %s97 = sshll.u32 [#allocation8], 4
      %s98 = int_to_ptr.vmem [resolvable:$true] %s97
      %100 = dma.vmem_to_hbm [thread:$0]  %s98, 32, %s3, [#allocation5]
    $region33: #{tpu_custom_call.1} parent=1 // pred_fallthru
      _
    // Predicated region
    $region34: #{tpu_custom_call.1} parent=1 // pred_check
      _
    $region35: #{tpu_custom_call.1} parent=1 // pred_check_branch
      %102 = sbr.rel (0) target = $region37
    $region36: #{tpu_custom_call.1} parent=1 // pred_region
      %103 = dma.done [#allocation5], 32
    $region37: #{tpu_custom_call.1} parent=1 // pred_fallthru
      _
    %104 = vsyncpa [#allocation4], 1
    %105 = vsyncpa [#allocation7], 1
    %106 = vsyncpa [#allocation5], 1

</llo_original>
